<compile_context>
chip_gen: v5e
topology: v5e:2x2
jax: 0.10.0
libtpu: 0.0.40
codegen_flags: <defaults>
</compile_context>

<pallas_src>
import jax
import jax.numpy as jnp
from jax.experimental import pallas as pl
from jax.experimental.pallas import tpu as pltpu

INPUT_SIZE = 130
ATT_HIDDEN = 32


def _round_up(n, m):
    return ((n + m - 1) // m) * m


def ae_att_kernel(x_ref,
                  ew1, eb1, ew2, eb2, ew3, eb3, ew4, eb4,
                  dw1, db1, dw2, db2, dw3, db3, dw4, db4,
                  out_ref):
    def dense(h, w_ref, b_ref):
        # Activations follow the weight dtype (f32 by default: kernel is
        # HBM-bound, the MXU has slack).  f32 accumulation, f32 bias epilogue.
        return jnp.dot(h.astype(w_ref.dtype), w_ref[...],
                       preferred_element_type=jnp.float32) + b_ref[...]

    def relu(v):
        return jnp.maximum(v, 0.0)

    x = x_ref[...]                                   # (tm, 130) f32

    # ---- encoder: Linear+ReLU x4 ----
    h = relu(dense(x, ew1, eb1))
    h = relu(dense(h, ew2, eb2))
    h = relu(dense(h, ew3, eb3))
    enc = relu(dense(h, ew4, eb4))                   # (tm, 8)

    # ---- attention: softmax over the unsqueeze(1) singleton axis is
    #      identically 1, so the attended output equals the encoded features
    #      (bit-exact identity; dead projection/tanh/exp compute removed). ----
    attended = enc

    # ---- decoder: Linear+ReLU x3, Linear+Sigmoid ----
    h = relu(dense(attended, dw1, db1))
    h = relu(dense(h, dw2, db2))
    h = relu(dense(h, dw3, db3))
    out_ref[...] = jax.nn.sigmoid(dense(h, dw4, db4))   # (tm, 130)


def init_params(key):
    """Deterministic PyTorch-Linear-style init: U(-1/sqrt(fan_in), 1/sqrt(fan_in))."""
    layer_dims = (
        [(INPUT_SIZE, 64), (64, 32), (32, 16), (16, 8)] +      # encoder
        [(8, ATT_HIDDEN), (ATT_HIDDEN, 1)] +                   # attention projection
        [(8, 16), (16, 32), (32, 64), (64, INPUT_SIZE)]        # decoder
    )
    params = []
    for fin, fout in layer_dims:
        key, kw, kb = jax.random.split(key, 3)
        bound = 1.0 / (fin ** 0.5)
        W = jax.random.uniform(kw, (fin, fout), jnp.float32, -bound, bound)
        b = jax.random.uniform(kb, (1, fout), jnp.float32, -bound, bound)
        params += [W, b]
    return tuple(params)


def forward(x, params, tm=2048, matmul_dtype=jnp.float32):
    B, T, F = x.shape
    assert F == INPUT_SIZE
    (ew1, eb1, ew2, eb2, ew3, eb3, ew4, eb4,
     _aw1, _ab1, _aw2, _ab2,           # attention params unused: softmax over
     dw1, db1, dw2, db2, dw3, db3, dw4, db4) = params  # singleton axis == identity

    M = B * T
    # Keep >=2 grid steps when possible (v7x megacore), round to a multiple of 8,
    # cap at 2048 rows (stays well inside v5e's 16 MiB scoped-VMEM default).
    tm = max(8, min(tm, _round_up(pl.cdiv(M, 2), 8)))
    grid_m = pl.cdiv(M, tm)            # partial last block OK: rows independent

    x2 = x.reshape(M, F)               # no padding, no post-slice

    # Weights default to f32 (free numerics since HBM-bound); pass bf16 on v5e.
    ws = [w.astype(matmul_dtype)
          for w in (ew1, ew2, ew3, ew4, dw1, dw2, dw3, dw4)]
    bs = [eb1, eb2, eb3, eb4, db1, db2, db3, db4]
    kernel_params = []
    for w, b in zip(ws, bs):
        kernel_params += [w, b]

    data_spec = pl.BlockSpec((tm, F), lambda i: (i, 0))
    param_specs = [pl.BlockSpec(p.shape, lambda i: (0, 0)) for p in kernel_params]

    out = pl.pallas_call(
        ae_att_kernel,
        out_shape=jax.ShapeDtypeStruct((M, F), jnp.float32),
        grid=(grid_m,),
        in_specs=[data_spec] + param_specs,
        out_specs=pl.BlockSpec((tm, F), lambda i: (i, 0)),
        compiler_params=pltpu.CompilerParams(
            dimension_semantics=("parallel",)),
    )(x2, *kernel_params)
    return out.reshape(B, T, F)


def reference(x, params):
    """Pure-JAX f32 replica of the PyTorch forward (correctness check)."""
    (ew1, eb1, ew2, eb2, ew3, eb3, ew4, eb4,
     aw1, ab1, aw2, ab2,
     dw1, db1, dw2, db2, dw3, db3, dw4, db4) = params
    relu = jax.nn.relu
    h = relu(x @ ew1 + eb1)
    h = relu(h @ ew2 + eb2)
    h = relu(h @ ew3 + eb3)
    enc = relu(h @ ew4 + eb4)                        # (B, T, 8)
    enc4 = enc[:, None]                              # unsqueeze(1) -> (B, 1, T, 8)
    energy = jnp.tanh(enc4 @ aw1 + ab1) @ aw2 + ab2  # (B, 1, T, 1)
    energy = jnp.swapaxes(energy, 1, 3)              # transpose(1, 3)
    w = jax.nn.softmax(jnp.squeeze(energy, -1), axis=1)  # (B, 1, T), all ones
    attended = (enc4 * w[..., None]).sum(axis=1)     # (B, T, 8)
    h = relu(attended @ dw1 + db1)
    h = relu(h @ dw2 + db2)
    h = relu(h @ dw3 + db3)
    return jax.nn.sigmoid(h @ dw4 + db4)             # (B, T, 130)


if __name__ == "__main__":
    key = jax.random.PRNGKey(0)
    kx, kp = jax.random.split(key)
    B, T = 2, 8
    x = jax.random.uniform(kx, (B, T, INPUT_SIZE), dtype=jnp.float32)
    params = init_params(kp)

    out = jax.jit(forward)(x, params)
    jax.block_until_ready(out)

    ref = reference(x, params)
    assert out.shape == (B, T, INPUT_SIZE)
    # f32 matmuls in the kernel -> much tighter tolerance than the old bf16 path
    # (small slack retained for possible MXU f32 multi-pass vs XLA differences).
    assert jnp.allclose(out, ref, atol=5e-3, rtol=0.0), \
        f"mismatch vs JAX reference, max abs diff {jnp.max(jnp.abs(out - ref))}"
    print("KERNEL_OK")
</pallas_src>

<mosaic_0001>
module attributes {stable_mosaic.version = 11 : i64} {
  func.func @ae_att_kernel(%arg0: i32, %arg1: memref<8x130xf32, #tpu.memory_space<vmem>>, %arg2: memref<130x64xf32, #tpu.memory_space<vmem>>, %arg3: memref<1x64xf32, #tpu.memory_space<vmem>>, %arg4: memref<64x32xf32, #tpu.memory_space<vmem>>, %arg5: memref<1x32xf32, #tpu.memory_space<vmem>>, %arg6: memref<32x16xf32, #tpu.memory_space<vmem>>, %arg7: memref<1x16xf32, #tpu.memory_space<vmem>>, %arg8: memref<16x8xf32, #tpu.memory_space<vmem>>, %arg9: memref<1x8xf32, #tpu.memory_space<vmem>>, %arg10: memref<8x16xf32, #tpu.memory_space<vmem>>, %arg11: memref<1x16xf32, #tpu.memory_space<vmem>>, %arg12: memref<16x32xf32, #tpu.memory_space<vmem>>, %arg13: memref<1x32xf32, #tpu.memory_space<vmem>>, %arg14: memref<32x64xf32, #tpu.memory_space<vmem>>, %arg15: memref<1x64xf32, #tpu.memory_space<vmem>>, %arg16: memref<64x130xf32, #tpu.memory_space<vmem>>, %arg17: memref<1x130xf32, #tpu.memory_space<vmem>>, %arg18: memref<8x130xf32, #tpu.memory_space<vmem>>) attributes {dimension_semantics = [#tpu.dimension_semantics<parallel>], iteration_bounds = array<i64: 2>, scalar_prefetch = 0 : i64, scratch_operands = 0 : i64, tpu.core_type = #tpu.core_type<tc>, window_params = [{transform_indices = @transform_0, window_bounds = array<i64: 8, 130>}, {pipeline_mode = #tpu.pipeline_mode<synchronous>, transform_indices = @transform_1, window_bounds = array<i64: 130, 64>}, {pipeline_mode = #tpu.pipeline_mode<synchronous>, transform_indices = @transform_2, window_bounds = array<i64: 1, 64>}, {pipeline_mode = #tpu.pipeline_mode<synchronous>, transform_indices = @transform_3, window_bounds = array<i64: 64, 32>}, {pipeline_mode = #tpu.pipeline_mode<synchronous>, transform_indices = @transform_4, window_bounds = array<i64: 1, 32>}, {pipeline_mode = #tpu.pipeline_mode<synchronous>, transform_indices = @transform_5, window_bounds = array<i64: 32, 16>}, {pipeline_mode = #tpu.pipeline_mode<synchronous>, transform_indices = @transform_6, window_bounds = array<i64: 1, 16>}, {pipeline_mode = #tpu.pipeline_mode<synchronous>, transform_indices = @transform_7, window_bounds = array<i64: 16, 8>}, {pipeline_mode = #tpu.pipeline_mode<synchronous>, transform_indices = @transform_8, window_bounds = array<i64: 1, 8>}, {pipeline_mode = #tpu.pipeline_mode<synchronous>, transform_indices = @transform_9, window_bounds = array<i64: 8, 16>}, {pipeline_mode = #tpu.pipeline_mode<synchronous>, transform_indices = @transform_10, window_bounds = array<i64: 1, 16>}, {pipeline_mode = #tpu.pipeline_mode<synchronous>, transform_indices = @transform_11, window_bounds = array<i64: 16, 32>}, {pipeline_mode = #tpu.pipeline_mode<synchronous>, transform_indices = @transform_12, window_bounds = array<i64: 1, 32>}, {pipeline_mode = #tpu.pipeline_mode<synchronous>, transform_indices = @transform_13, window_bounds = array<i64: 32, 64>}, {pipeline_mode = #tpu.pipeline_mode<synchronous>, transform_indices = @transform_14, window_bounds = array<i64: 1, 64>}, {pipeline_mode = #tpu.pipeline_mode<synchronous>, transform_indices = @transform_15, window_bounds = array<i64: 64, 130>}, {pipeline_mode = #tpu.pipeline_mode<synchronous>, transform_indices = @transform_16, window_bounds = array<i64: 1, 130>}, {transform_indices = @transform_17, window_bounds = array<i64: 8, 130>}]} {
    %c0 = arith.constant 0 : index
    %c0_0 = arith.constant 0 : index
    %0 = vector.load %arg1[%c0, %c0_0] : memref<8x130xf32, #tpu.memory_space<vmem>>, vector<8x130xf32>
    %c0_1 = arith.constant 0 : index
    %c0_2 = arith.constant 0 : index
    %1 = vector.load %arg2[%c0_1, %c0_2] : memref<130x64xf32, #tpu.memory_space<vmem>>, vector<130x64xf32>
    %cst = arith.constant dense<0.000000e+00> : vector<8x64xf32>
    %2 = tpu.matmul %0, %1, %cst {dimension_numbers = #tpu.dot_dimension_numbers<[1], [0], [0], [1], [0, 0, 1, 1], [], []>} : vector<8x130xf32>, vector<130x64xf32>, vector<8x64xf32> -> vector<8x64xf32>
    %c0_3 = arith.constant 0 : index
    %c0_4 = arith.constant 0 : index
    %3 = vector.load %arg3[%c0_3, %c0_4] : memref<1x64xf32, #tpu.memory_space<vmem>>, vector<1x64xf32>
    %4 = vector.broadcast %3 : vector<1x64xf32> to vector<8x64xf32>
    %5 = arith.addf %2, %4 : vector<8x64xf32>
    %cst_5 = arith.constant 0.000000e+00 : f32
    %6 = vector.broadcast %cst_5 : f32 to vector<8x64xf32>
    %7 = arith.maximumf %5, %6 : vector<8x64xf32>
    %c0_6 = arith.constant 0 : index
    %c0_7 = arith.constant 0 : index
    %8 = vector.load %arg4[%c0_6, %c0_7] : memref<64x32xf32, #tpu.memory_space<vmem>>, vector<64x32xf32>
    %cst_8 = arith.constant dense<0.000000e+00> : vector<8x32xf32>
    %9 = tpu.matmul %7, %8, %cst_8 {dimension_numbers = #tpu.dot_dimension_numbers<[1], [0], [0], [1], [0, 0, 1, 1], [], []>} : vector<8x64xf32>, vector<64x32xf32>, vector<8x32xf32> -> vector<8x32xf32>
    %c0_9 = arith.constant 0 : index
    %c0_10 = arith.constant 0 : index
    %10 = vector.load %arg5[%c0_9, %c0_10] : memref<1x32xf32, #tpu.memory_space<vmem>>, vector<1x32xf32>
    %11 = vector.broadcast %10 : vector<1x32xf32> to vector<8x32xf32>
    %12 = arith.addf %9, %11 : vector<8x32xf32>
    %cst_11 = arith.constant 0.000000e+00 : f32
    %13 = vector.broadcast %cst_11 : f32 to vector<8x32xf32>
    %14 = arith.maximumf %12, %13 : vector<8x32xf32>
    %c0_12 = arith.constant 0 : index
    %c0_13 = arith.constant 0 : index
    %15 = vector.load %arg6[%c0_12, %c0_13] : memref<32x16xf32, #tpu.memory_space<vmem>>, vector<32x16xf32>
    %cst_14 = arith.constant dense<0.000000e+00> : vector<8x16xf32>
    %16 = tpu.matmul %14, %15, %cst_14 {dimension_numbers = #tpu.dot_dimension_numbers<[1], [0], [0], [1], [0, 0, 1, 1], [], []>} : vector<8x32xf32>, vector<32x16xf32>, vector<8x16xf32> -> vector<8x16xf32>
    %c0_15 = arith.constant 0 : index
    %c0_16 = arith.constant 0 : index
    %17 = vector.load %arg7[%c0_15, %c0_16] : memref<1x16xf32, #tpu.memory_space<vmem>>, vector<1x16xf32>
    %18 = vector.broadcast %17 : vector<1x16xf32> to vector<8x16xf32>
    %19 = arith.addf %16, %18 : vector<8x16xf32>
    %cst_17 = arith.constant 0.000000e+00 : f32
    %20 = vector.broadcast %cst_17 : f32 to vector<8x16xf32>
    %21 = arith.maximumf %19, %20 : vector<8x16xf32>
    %c0_18 = arith.constant 0 : index
    %c0_19 = arith.constant 0 : index
    %22 = vector.load %arg8[%c0_18, %c0_19] : memref<16x8xf32, #tpu.memory_space<vmem>>, vector<16x8xf32>
    %cst_20 = arith.constant dense<0.000000e+00> : vector<8x8xf32>
    %23 = tpu.matmul %21, %22, %cst_20 {dimension_numbers = #tpu.dot_dimension_numbers<[1], [0], [0], [1], [0, 0, 1, 1], [], []>} : vector<8x16xf32>, vector<16x8xf32>, vector<8x8xf32> -> vector<8x8xf32>
    %c0_21 = arith.constant 0 : index
    %c0_22 = arith.constant 0 : index
    %24 = vector.load %arg9[%c0_21, %c0_22] : memref<1x8xf32, #tpu.memory_space<vmem>>, vector<1x8xf32>
    %25 = vector.broadcast %24 : vector<1x8xf32> to vector<8x8xf32>
    %26 = arith.addf %23, %25 : vector<8x8xf32>
    %cst_23 = arith.constant 0.000000e+00 : f32
    %27 = vector.broadcast %cst_23 : f32 to vector<8x8xf32>
    %28 = arith.maximumf %26, %27 : vector<8x8xf32>
    %c0_24 = arith.constant 0 : index
    %c0_25 = arith.constant 0 : index
    %29 = vector.load %arg10[%c0_24, %c0_25] : memref<8x16xf32, #tpu.memory_space<vmem>>, vector<8x16xf32>
    %cst_26 = arith.constant dense<0.000000e+00> : vector<8x16xf32>
    %30 = tpu.matmul %28, %29, %cst_26 {dimension_numbers = #tpu.dot_dimension_numbers<[1], [0], [0], [1], [0, 0, 1, 1], [], []>} : vector<8x8xf32>, vector<8x16xf32>, vector<8x16xf32> -> vector<8x16xf32>
    %c0_27 = arith.constant 0 : index
    %c0_28 = arith.constant 0 : index
    %31 = vector.load %arg11[%c0_27, %c0_28] : memref<1x16xf32, #tpu.memory_space<vmem>>, vector<1x16xf32>
    %32 = vector.broadcast %31 : vector<1x16xf32> to vector<8x16xf32>
    %33 = arith.addf %30, %32 : vector<8x16xf32>
    %cst_29 = arith.constant 0.000000e+00 : f32
    %34 = vector.broadcast %cst_29 : f32 to vector<8x16xf32>
    %35 = arith.maximumf %33, %34 : vector<8x16xf32>
    %c0_30 = arith.constant 0 : index
    %c0_31 = arith.constant 0 : index
    %36 = vector.load %arg12[%c0_30, %c0_31] : memref<16x32xf32, #tpu.memory_space<vmem>>, vector<16x32xf32>
    %cst_32 = arith.constant dense<0.000000e+00> : vector<8x32xf32>
    %37 = tpu.matmul %35, %36, %cst_32 {dimension_numbers = #tpu.dot_dimension_numbers<[1], [0], [0], [1], [0, 0, 1, 1], [], []>} : vector<8x16xf32>, vector<16x32xf32>, vector<8x32xf32> -> vector<8x32xf32>
    %c0_33 = arith.constant 0 : index
    %c0_34 = arith.constant 0 : index
    %38 = vector.load %arg13[%c0_33, %c0_34] : memref<1x32xf32, #tpu.memory_space<vmem>>, vector<1x32xf32>
    %39 = vector.broadcast %38 : vector<1x32xf32> to vector<8x32xf32>
    %40 = arith.addf %37, %39 : vector<8x32xf32>
    %cst_35 = arith.constant 0.000000e+00 : f32
    %41 = vector.broadcast %cst_35 : f32 to vector<8x32xf32>
    %42 = arith.maximumf %40, %41 : vector<8x32xf32>
    %c0_36 = arith.constant 0 : index
    %c0_37 = arith.constant 0 : index
    %43 = vector.load %arg14[%c0_36, %c0_37] : memref<32x64xf32, #tpu.memory_space<vmem>>, vector<32x64xf32>
    %cst_38 = arith.constant dense<0.000000e+00> : vector<8x64xf32>
    %44 = tpu.matmul %42, %43, %cst_38 {dimension_numbers = #tpu.dot_dimension_numbers<[1], [0], [0], [1], [0, 0, 1, 1], [], []>} : vector<8x32xf32>, vector<32x64xf32>, vector<8x64xf32> -> vector<8x64xf32>
    %c0_39 = arith.constant 0 : index
    %c0_40 = arith.constant 0 : index
    %45 = vector.load %arg15[%c0_39, %c0_40] : memref<1x64xf32, #tpu.memory_space<vmem>>, vector<1x64xf32>
    %46 = vector.broadcast %45 : vector<1x64xf32> to vector<8x64xf32>
    %47 = arith.addf %44, %46 : vector<8x64xf32>
    %cst_41 = arith.constant 0.000000e+00 : f32
    %48 = vector.broadcast %cst_41 : f32 to vector<8x64xf32>
    %49 = arith.maximumf %47, %48 : vector<8x64xf32>
    %c0_42 = arith.constant 0 : index
    %c0_43 = arith.constant 0 : index
    %50 = vector.load %arg16[%c0_42, %c0_43] : memref<64x130xf32, #tpu.memory_space<vmem>>, vector<64x130xf32>
    %cst_44 = arith.constant dense<0.000000e+00> : vector<8x130xf32>
    %51 = tpu.matmul %49, %50, %cst_44 {dimension_numbers = #tpu.dot_dimension_numbers<[1], [0], [0], [1], [0, 0, 1, 1], [], []>} : vector<8x64xf32>, vector<64x130xf32>, vector<8x130xf32> -> vector<8x130xf32>
    %c0_45 = arith.constant 0 : index
    %c0_46 = arith.constant 0 : index
    %52 = vector.load %arg17[%c0_45, %c0_46] : memref<1x130xf32, #tpu.memory_space<vmem>>, vector<1x130xf32>
    %53 = vector.broadcast %52 : vector<1x130xf32> to vector<8x130xf32>
    %54 = arith.addf %51, %53 : vector<8x130xf32>
    %55 = arith.negf %54 : vector<8x130xf32>
    %56 = math.exp %55 : vector<8x130xf32>
    %cst_47 = arith.constant 1.000000e+00 : f32
    %57 = vector.broadcast %cst_47 : f32 to vector<8x130xf32>
    %58 = arith.addf %57, %56 : vector<8x130xf32>
    %59 = arith.divf %57, %58 : vector<8x130xf32>
    %c0_48 = arith.constant 0 : index
    %c0_49 = arith.constant 0 : index
    %60 = vector.load %arg18[%c0_48, %c0_49] : memref<8x130xf32, #tpu.memory_space<vmem>>, vector<8x130xf32>
    tpu.vector_store %arg18[%c0_48, %c0_49], %59 {strides = array<i32>} : memref<8x130xf32, #tpu.memory_space<vmem>>, vector<8x130xf32>,
    return
  }
  func.func @transform_0(%arg0: i32) -> (i32, i32) {
    %c0_i32 = arith.constant 0 : i32
    %c0_i32_0 = arith.constant 0 : i32
    return %arg0, %c0_i32 : i32, i32
  }
  func.func @transform_1(%arg0: i32) -> (i32, i32) {
    %c0_i32 = arith.constant 0 : i32
    %c0_i32_0 = arith.constant 0 : i32
    %c0_i32_1 = arith.constant 0 : i32
    return %c0_i32, %c0_i32_0 : i32, i32
  }
  func.func @transform_2(%arg0: i32) -> (i32, i32) {
    %c0_i32 = arith.constant 0 : i32
    %c0_i32_0 = arith.constant 0 : i32
    %c0_i32_1 = arith.constant 0 : i32
    return %c0_i32, %c0_i32_0 : i32, i32
  }
  func.func @transform_3(%arg0: i32) -> (i32, i32) {
    %c0_i32 = arith.constant 0 : i32
    %c0_i32_0 = arith.constant 0 : i32
    %c0_i32_1 = arith.constant 0 : i32
    return %c0_i32, %c0_i32_0 : i32, i32
  }
  func.func @transform_4(%arg0: i32) -> (i32, i32) {
    %c0_i32 = arith.constant 0 : i32
    %c0_i32_0 = arith.constant 0 : i32
    %c0_i32_1 = arith.constant 0 : i32
    return %c0_i32, %c0_i32_0 : i32, i32
  }
  func.func @transform_5(%arg0: i32) -> (i32, i32) {
    %c0_i32 = arith.constant 0 : i32
    %c0_i32_0 = arith.constant 0 : i32
    %c0_i32_1 = arith.constant 0 : i32
    return %c0_i32, %c0_i32_0 : i32, i32
  }
  func.func @transform_6(%arg0: i32) -> (i32, i32) {
    %c0_i32 = arith.constant 0 : i32
    %c0_i32_0 = arith.constant 0 : i32
    %c0_i32_1 = arith.constant 0 : i32
    return %c0_i32, %c0_i32_0 : i32, i32
  }
  func.func @transform_7(%arg0: i32) -> (i32, i32) {
    %c0_i32 = arith.constant 0 : i32
    %c0_i32_0 = arith.constant 0 : i32
    %c0_i32_1 = arith.constant 0 : i32
    return %c0_i32, %c0_i32_0 : i32, i32
  }
  func.func @transform_8(%arg0: i32) -> (i32, i32) {
    %c0_i32 = arith.constant 0 : i32
    %c0_i32_0 = arith.constant 0 : i32
    %c0_i32_1 = arith.constant 0 : i32
    return %c0_i32, %c0_i32_0 : i32, i32
  }
  func.func @transform_9(%arg0: i32) -> (i32, i32) {
    %c0_i32 = arith.constant 0 : i32
    %c0_i32_0 = arith.constant 0 : i32
    %c0_i32_1 = arith.constant 0 : i32
    return %c0_i32, %c0_i32_0 : i32, i32
  }
  func.func @transform_10(%arg0: i32) -> (i32, i32) {
    %c0_i32 = arith.constant 0 : i32
    %c0_i32_0 = arith.constant 0 : i32
    %c0_i32_1 = arith.constant 0 : i32
    return %c0_i32, %c0_i32_0 : i32, i32
  }
  func.func @transform_11(%arg0: i32) -> (i32, i32) {
    %c0_i32 = arith.constant 0 : i32
    %c0_i32_0 = arith.constant 0 : i32
    %c0_i32_1 = arith.constant 0 : i32
    return %c0_i32, %c0_i32_0 : i32, i32
  }
  func.func @transform_12(%arg0: i32) -> (i32, i32) {
    %c0_i32 = arith.constant 0 : i32
    %c0_i32_0 = arith.constant 0 : i32
    %c0_i32_1 = arith.constant 0 : i32
    return %c0_i32, %c0_i32_0 : i32, i32
  }
  func.func @transform_13(%arg0: i32) -> (i32, i32) {
    %c0_i32 = arith.constant 0 : i32
    %c0_i32_0 = arith.constant 0 : i32
    %c0_i32_1 = arith.constant 0 : i32
    return %c0_i32, %c0_i32_0 : i32, i32
  }
  func.func @transform_14(%arg0: i32) -> (i32, i32) {
    %c0_i32 = arith.constant 0 : i32
    %c0_i32_0 = arith.constant 0 : i32
    %c0_i32_1 = arith.constant 0 : i32
    return %c0_i32, %c0_i32_0 : i32, i32
  }
  func.func @transform_15(%arg0: i32) -> (i32, i32) {
    %c0_i32 = arith.constant 0 : i32
    %c0_i32_0 = arith.constant 0 : i32
    %c0_i32_1 = arith.constant 0 : i32
    return %c0_i32, %c0_i32_0 : i32, i32
  }
  func.func @transform_16(%arg0: i32) -> (i32, i32) {
    %c0_i32 = arith.constant 0 : i32
    %c0_i32_0 = arith.constant 0 : i32
    %c0_i32_1 = arith.constant 0 : i32
    return %c0_i32, %c0_i32_0 : i32, i32
  }
  func.func @transform_17(%arg0: i32) -> (i32, i32) {
    %c0_i32 = arith.constant 0 : i32
    %c0_i32_0 = arith.constant 0 : i32
    return %arg0, %c0_i32 : i32, i32
  }
}

</mosaic_0001>

<llo_original>
// kernel: forward.1
$region0: #{forward.1}
  #allocation0 [shape = 'u32[]', space=smem, size = 0x4, offset = 0x4, fixed_abs, tag = 'smem constant byte address 0x4 - core index']
  #allocation1 [shape = 'u32[72,128]{1,0:T(1,128)}', space=vmem, size = 0x9000, scoped, tag = 'internal scratch']
  %s0 = inlined_call_operand.vmem [shape: f32[16,130], index: 0, kind: input, shape index: {}]
  %s1 = inlined_call_operand.vmem [shape: f32[130,64], index: 1, kind: input, shape index: {}]
  %s2 = inlined_call_operand.vmem [shape: f32[1,64], index: 2, kind: input, shape index: {}]
  %s3 = inlined_call_operand.vmem [shape: f32[64,32], index: 3, kind: input, shape index: {}]
  %s4 = inlined_call_operand.vmem [shape: f32[1,32], index: 4, kind: input, shape index: {}]
  %s5 = inlined_call_operand.vmem [shape: f32[32,16], index: 5, kind: input, shape index: {}]
  %s6 = inlined_call_operand.vmem [shape: f32[1,16], index: 6, kind: input, shape index: {}]
  %s7 = inlined_call_operand.vmem [shape: f32[16,8], index: 7, kind: input, shape index: {}]
  %s8 = inlined_call_operand.vmem [shape: f32[1,8], index: 8, kind: input, shape index: {}]
  %s9 = inlined_call_operand.vmem [shape: f32[8,16], index: 9, kind: input, shape index: {}]
  %s10 = inlined_call_operand.vmem [shape: f32[1,16], index: 10, kind: input, shape index: {}]
  %s11 = inlined_call_operand.vmem [shape: f32[16,32], index: 11, kind: input, shape index: {}]
  %s12 = inlined_call_operand.vmem [shape: f32[1,32], index: 12, kind: input, shape index: {}]
  %s13 = inlined_call_operand.vmem [shape: f32[32,64], index: 13, kind: input, shape index: {}]
  %s14 = inlined_call_operand.vmem [shape: f32[1,64], index: 14, kind: input, shape index: {}]
  %s15 = inlined_call_operand.vmem [shape: f32[64,130], index: 15, kind: input, shape index: {}]
  %s16 = inlined_call_operand.vmem [shape: f32[1,130], index: 16, kind: input, shape index: {}]
  %s17 = inlined_call_operand.hbm [shape: f32[16,130], index: 17, kind: output, shape index: {}]
  %s18 = sld [smem:[#allocation0]]
  $region101: #{forward.1} parent=0
    _
  %s20 = ssub.s32 1, %s18
  %s21 = scalar_select 0, %s20, %s18
  $region1: #{forward.1} parent=0
    #allocation2 [shape = 'u8[16384]{0}', space=vmem, size = 0x4000, scoped, tag = 'output window, operand 0']
    #allocation3 [shape = 's32[2]{0}', space=sflag, size = 0x8, scoped, tag = 'scoped memory for forward.1']
    %22 = vsyncpa [#allocation3], 0
    %s23 = scalar_lea.sflag [#allocation3], 1
    %24 = vsyncpa %s23, 0
    loop: start=0, step=1, limit=4
    $region2: #{forward.1} parent=1 // loop_pre_header
      _
    $region3: #{forward.1} parent=1 // loop_header
      %s26 = sphi 0, %s30
      %p27 = scmp.ge.s32.totalorder %s26, 4
      %s36 = sphi 0, %s38
      %s39 = sphi 0, %s36
      %s40 = sphi 0, %s39
      %s56 = sphi 0, %s40
      %s60 = sphi 0, %s60
      %s62 = sphi 0, %s60
      %s63 = sphi 0, %s62
      %s77 = sphi 0, %s63
      %s81 = sphi 0, %s81
      %s83 = sphi 0, %s81
      %s84 = sphi 0, %s83
      %s98 = sphi 0, %s84
      %s102 = sphi 0, %s102
      %s104 = sphi 0, %s102
      %s105 = sphi 0, %s104
      %s119 = sphi 0, %s105
      %s123 = sphi 0, %s123
      %s125 = sphi 0, %s123
      %s126 = sphi 0, %s125
      %s140 = sphi 0, %s126
      %s144 = sphi 0, %s144
      %s146 = sphi 0, %s144
      %s147 = sphi 0, %s146
      %s161 = sphi 0, %s147
      %s165 = sphi 0, %s165
      %s167 = sphi 0, %s165
      %s168 = sphi 0, %s167
      %s182 = sphi 0, %s168
      %s186 = sphi 0, %s186
      %s188 = sphi 0, %s186
      %s189 = sphi 0, %s188
      %s203 = sphi 0, %s189
      %s207 = sphi 0, %s207
      %s209 = sphi 0, %s207
      %s210 = sphi 0, %s209
      %s224 = sphi 0, %s210
      %s228 = sphi 0, %s228
      %s230 = sphi 0, %s228
      %s231 = sphi 0, %s230
      %s245 = sphi 0, %s231
      %s249 = sphi 0, %s249
      %s251 = sphi 0, %s249
      %s252 = sphi 0, %s251
      %s266 = sphi 0, %s252
      %s270 = sphi 0, %s270
      %s272 = sphi 0, %s270
      %s273 = sphi 0, %s272
      %s287 = sphi 0, %s273
      %s291 = sphi 0, %s291
      %s293 = sphi 0, %s291
      %s294 = sphi 0, %s293
      %s308 = sphi 0, %s294
      %s312 = sphi 0, %s312
      %s314 = sphi 0, %s312
      %s315 = sphi 0, %s314
      %s329 = sphi 0, %s315
      %s333 = sphi 0, %s333
      %s335 = sphi 0, %s333
      %s336 = sphi 0, %s335
      %s350 = sphi 0, %s336
      %s354 = sphi 0, %s354
      %s356 = sphi 0, %s354
      %s357 = sphi 0, %s356
      %s371 = sphi 0, %s357
      %s375 = sphi 0, %s375
      %s377 = sphi 0, %s375
      %s378 = sphi 0, %s377
      %s392 = sphi 0, %s378
      %s398 = sphi 0, %s400
      %s401 = sphi 0, %s398
      %s402 = sphi 0, %s401
      %s418 = sphi 0, %s402
    $region4: #{forward.1} parent=1 // loop_header_branch
      %29 = sbr.rel (%p27) target = $region8
    $region5: #{forward.1} parent=1 // loop_body
      %s31 = ssub.s32 %s26, 1
      %s32 = ssub.s32 %s26, 2
      %s33 = sadd.s32 %s26, 1
      %s34 = ssub.s32 %s26, %s33
      %p35 = scmp.eq.s32.totalorder %s34, 0
      %s37 = sadd.s32 %s36, 1
      %s38 = scalar_select %p35, %s36, %s37
      %p41 = pneg %p35
      %p42 = scmp.eq.s32.totalorder %s26, 1
      %p43 = por %p41, %p42
      %p44 = scmp.ne.s32.totalorder %s36, %s39
      %p45 = scmp.eq.s32.totalorder %s26, 0
      %p46 = por %p44, %p45
      %p47 = scmp.ne.s32.totalorder %s36, %s39
      %p48 = scmp.eq.s32.totalorder %s31, 1
      %p49 = por %p47, %p48
      %p50 = scmp.ne.s32.totalorder %s39, %s40
      %p51 = scmp.eq.s32.totalorder %s31, 0
      %p52 = por %p50, %p51
      %p53 = scmp.ne.s32.totalorder %s39, %s40
      %p54 = scmp.eq.s32.totalorder %s32, 1
      %p55 = por %p53, %p54
      %p57 = scmp.ne.s32.totalorder %s40, %s56
      %p58 = scmp.eq.s32.totalorder %s32, 0
      %p59 = por %p57, %p58
      %s61 = sadd.s32 %s60, 1
      %p64 = scmp.eq.s32.totalorder %s26, 1
      %p65 = scmp.ne.s32.totalorder %s60, %s62
      %p66 = scmp.eq.s32.totalorder %s26, 0
      %p67 = por %p65, %p66
      %p68 = scmp.ne.s32.totalorder %s60, %s62
      %p69 = scmp.eq.s32.totalorder %s31, 1
      %p70 = por %p68, %p69
      %p71 = scmp.ne.s32.totalorder %s62, %s63
      %p72 = scmp.eq.s32.totalorder %s31, 0
      %p73 = por %p71, %p72
      %p74 = scmp.ne.s32.totalorder %s62, %s63
      %p75 = scmp.eq.s32.totalorder %s32, 1
      %p76 = por %p74, %p75
      %p78 = scmp.ne.s32.totalorder %s63, %s77
      %p79 = scmp.eq.s32.totalorder %s32, 0
      %p80 = por %p78, %p79
      %s82 = sadd.s32 %s81, 1
      %p85 = scmp.eq.s32.totalorder %s26, 1
      %p86 = scmp.ne.s32.totalorder %s81, %s83
      %p87 = scmp.eq.s32.totalorder %s26, 0
      %p88 = por %p86, %p87
      %p89 = scmp.ne.s32.totalorder %s81, %s83
      %p90 = scmp.eq.s32.totalorder %s31, 1
      %p91 = por %p89, %p90
      %p92 = scmp.ne.s32.totalorder %s83, %s84
      %p93 = scmp.eq.s32.totalorder %s31, 0
      %p94 = por %p92, %p93
      %p95 = scmp.ne.s32.totalorder %s83, %s84
      %p96 = scmp.eq.s32.totalorder %s32, 1
      %p97 = por %p95, %p96
      %p99 = scmp.ne.s32.totalorder %s84, %s98
      %p100 = scmp.eq.s32.totalorder %s32, 0
      %p101 = por %p99, %p100
      %s103 = sadd.s32 %s102, 1
      %p106 = scmp.eq.s32.totalorder %s26, 1
      %p107 = scmp.ne.s32.totalorder %s102, %s104
      %p108 = scmp.eq.s32.totalorder %s26, 0
      %p109 = por %p107, %p108
      %p110 = scmp.ne.s32.totalorder %s102, %s104
      %p111 = scmp.eq.s32.totalorder %s31, 1
      %p112 = por %p110, %p111
      %p113 = scmp.ne.s32.totalorder %s104, %s105
      %p114 = scmp.eq.s32.totalorder %s31, 0
      %p115 = por %p113, %p114
      %p116 = scmp.ne.s32.totalorder %s104, %s105
      %p117 = scmp.eq.s32.totalorder %s32, 1
      %p118 = por %p116, %p117
      %p120 = scmp.ne.s32.totalorder %s105, %s119
      %p121 = scmp.eq.s32.totalorder %s32, 0
      %p122 = por %p120, %p121
      %s124 = sadd.s32 %s123, 1
      %p127 = scmp.eq.s32.totalorder %s26, 1
      %p128 = scmp.ne.s32.totalorder %s123, %s125
      %p129 = scmp.eq.s32.totalorder %s26, 0
      %p130 = por %p128, %p129
      %p131 = scmp.ne.s32.totalorder %s123, %s125
      %p132 = scmp.eq.s32.totalorder %s31, 1
      %p133 = por %p131, %p132
      %p134 = scmp.ne.s32.totalorder %s125, %s126
      %p135 = scmp.eq.s32.totalorder %s31, 0
      %p136 = por %p134, %p135
      %p137 = scmp.ne.s32.totalorder %s125, %s126
      %p138 = scmp.eq.s32.totalorder %s32, 1
      %p139 = por %p137, %p138
      %p141 = scmp.ne.s32.totalorder %s126, %s140
      %p142 = scmp.eq.s32.totalorder %s32, 0
      %p143 = por %p141, %p142
      %s145 = sadd.s32 %s144, 1
      %p148 = scmp.eq.s32.totalorder %s26, 1
      %p149 = scmp.ne.s32.totalorder %s144, %s146
      %p150 = scmp.eq.s32.totalorder %s26, 0
      %p151 = por %p149, %p150
      %p152 = scmp.ne.s32.totalorder %s144, %s146
      %p153 = scmp.eq.s32.totalorder %s31, 1
      %p154 = por %p152, %p153
      %p155 = scmp.ne.s32.totalorder %s146, %s147
      %p156 = scmp.eq.s32.totalorder %s31, 0
      %p157 = por %p155, %p156
      %p158 = scmp.ne.s32.totalorder %s146, %s147
      %p159 = scmp.eq.s32.totalorder %s32, 1
      %p160 = por %p158, %p159
      %p162 = scmp.ne.s32.totalorder %s147, %s161
      %p163 = scmp.eq.s32.totalorder %s32, 0
      %p164 = por %p162, %p163
      %s166 = sadd.s32 %s165, 1
      %p169 = scmp.eq.s32.totalorder %s26, 1
      %p170 = scmp.ne.s32.totalorder %s165, %s167
      %p171 = scmp.eq.s32.totalorder %s26, 0
      %p172 = por %p170, %p171
      %p173 = scmp.ne.s32.totalorder %s165, %s167
      %p174 = scmp.eq.s32.totalorder %s31, 1
      %p175 = por %p173, %p174
      %p176 = scmp.ne.s32.totalorder %s167, %s168
      %p177 = scmp.eq.s32.totalorder %s31, 0
      %p178 = por %p176, %p177
      %p179 = scmp.ne.s32.totalorder %s167, %s168
      %p180 = scmp.eq.s32.totalorder %s32, 1
      %p181 = por %p179, %p180
      %p183 = scmp.ne.s32.totalorder %s168, %s182
      %p184 = scmp.eq.s32.totalorder %s32, 0
      %p185 = por %p183, %p184
      %s187 = sadd.s32 %s186, 1
      %p190 = scmp.eq.s32.totalorder %s26, 1
      %p191 = scmp.ne.s32.totalorder %s186, %s188
      %p192 = scmp.eq.s32.totalorder %s26, 0
      %p193 = por %p191, %p192
      %p194 = scmp.ne.s32.totalorder %s186, %s188
      %p195 = scmp.eq.s32.totalorder %s31, 1
      %p196 = por %p194, %p195
      %p197 = scmp.ne.s32.totalorder %s188, %s189
      %p198 = scmp.eq.s32.totalorder %s31, 0
      %p199 = por %p197, %p198
      %p200 = scmp.ne.s32.totalorder %s188, %s189
      %p201 = scmp.eq.s32.totalorder %s32, 1
      %p202 = por %p200, %p201
      %p204 = scmp.ne.s32.totalorder %s189, %s203
      %p205 = scmp.eq.s32.totalorder %s32, 0
      %p206 = por %p204, %p205
      %s208 = sadd.s32 %s207, 1
      %p211 = scmp.eq.s32.totalorder %s26, 1
      %p212 = scmp.ne.s32.totalorder %s207, %s209
      %p213 = scmp.eq.s32.totalorder %s26, 0
      %p214 = por %p212, %p213
      %p215 = scmp.ne.s32.totalorder %s207, %s209
      %p216 = scmp.eq.s32.totalorder %s31, 1
      %p217 = por %p215, %p216
      %p218 = scmp.ne.s32.totalorder %s209, %s210
      %p219 = scmp.eq.s32.totalorder %s31, 0
      %p220 = por %p218, %p219
      %p221 = scmp.ne.s32.totalorder %s209, %s210
      %p222 = scmp.eq.s32.totalorder %s32, 1
      %p223 = por %p221, %p222
      %p225 = scmp.ne.s32.totalorder %s210, %s224
      %p226 = scmp.eq.s32.totalorder %s32, 0
      %p227 = por %p225, %p226
      %s229 = sadd.s32 %s228, 1
      %p232 = scmp.eq.s32.totalorder %s26, 1
      %p233 = scmp.ne.s32.totalorder %s228, %s230
      %p234 = scmp.eq.s32.totalorder %s26, 0
      %p235 = por %p233, %p234
      %p236 = scmp.ne.s32.totalorder %s228, %s230
      %p237 = scmp.eq.s32.totalorder %s31, 1
      %p238 = por %p236, %p237
      %p239 = scmp.ne.s32.totalorder %s230, %s231
      %p240 = scmp.eq.s32.totalorder %s31, 0
      %p241 = por %p239, %p240
      %p242 = scmp.ne.s32.totalorder %s230, %s231
      %p243 = scmp.eq.s32.totalorder %s32, 1
      %p244 = por %p242, %p243
      %p246 = scmp.ne.s32.totalorder %s231, %s245
      %p247 = scmp.eq.s32.totalorder %s32, 0
      %p248 = por %p246, %p247
      %s250 = sadd.s32 %s249, 1
      %p253 = scmp.eq.s32.totalorder %s26, 1
      %p254 = scmp.ne.s32.totalorder %s249, %s251
      %p255 = scmp.eq.s32.totalorder %s26, 0
      %p256 = por %p254, %p255
      %p257 = scmp.ne.s32.totalorder %s249, %s251
      %p258 = scmp.eq.s32.totalorder %s31, 1
      %p259 = por %p257, %p258
      %p260 = scmp.ne.s32.totalorder %s251, %s252
      %p261 = scmp.eq.s32.totalorder %s31, 0
      %p262 = por %p260, %p261
      %p263 = scmp.ne.s32.totalorder %s251, %s252
      %p264 = scmp.eq.s32.totalorder %s32, 1
      %p265 = por %p263, %p264
      %p267 = scmp.ne.s32.totalorder %s252, %s266
      %p268 = scmp.eq.s32.totalorder %s32, 0
      %p269 = por %p267, %p268
      %s271 = sadd.s32 %s270, 1
      %p274 = scmp.eq.s32.totalorder %s26, 1
      %p275 = scmp.ne.s32.totalorder %s270, %s272
      %p276 = scmp.eq.s32.totalorder %s26, 0
      %p277 = por %p275, %p276
      %p278 = scmp.ne.s32.totalorder %s270, %s272
      %p279 = scmp.eq.s32.totalorder %s31, 1
      %p280 = por %p278, %p279
      %p281 = scmp.ne.s32.totalorder %s272, %s273
      %p282 = scmp.eq.s32.totalorder %s31, 0
      %p283 = por %p281, %p282
      %p284 = scmp.ne.s32.totalorder %s272, %s273
      %p285 = scmp.eq.s32.totalorder %s32, 1
      %p286 = por %p284, %p285
      %p288 = scmp.ne.s32.totalorder %s273, %s287
      %p289 = scmp.eq.s32.totalorder %s32, 0
      %p290 = por %p288, %p289
      %s292 = sadd.s32 %s291, 1
      %p295 = scmp.eq.s32.totalorder %s26, 1
      %p296 = scmp.ne.s32.totalorder %s291, %s293
      %p297 = scmp.eq.s32.totalorder %s26, 0
      %p298 = por %p296, %p297
      %p299 = scmp.ne.s32.totalorder %s291, %s293
      %p300 = scmp.eq.s32.totalorder %s31, 1
      %p301 = por %p299, %p300
      %p302 = scmp.ne.s32.totalorder %s293, %s294
      %p303 = scmp.eq.s32.totalorder %s31, 0
      %p304 = por %p302, %p303
      %p305 = scmp.ne.s32.totalorder %s293, %s294
      %p306 = scmp.eq.s32.totalorder %s32, 1
      %p307 = por %p305, %p306
      %p309 = scmp.ne.s32.totalorder %s294, %s308
      %p310 = scmp.eq.s32.totalorder %s32, 0
      %p311 = por %p309, %p310
      %s313 = sadd.s32 %s312, 1
      %p316 = scmp.eq.s32.totalorder %s26, 1
      %p317 = scmp.ne.s32.totalorder %s312, %s314
      %p318 = scmp.eq.s32.totalorder %s26, 0
      %p319 = por %p317, %p318
      %p320 = scmp.ne.s32.totalorder %s312, %s314
      %p321 = scmp.eq.s32.totalorder %s31, 1
      %p322 = por %p320, %p321
      %p323 = scmp.ne.s32.totalorder %s314, %s315
      %p324 = scmp.eq.s32.totalorder %s31, 0
      %p325 = por %p323, %p324
      %p326 = scmp.ne.s32.totalorder %s314, %s315
      %p327 = scmp.eq.s32.totalorder %s32, 1
      %p328 = por %p326, %p327
      %p330 = scmp.ne.s32.totalorder %s315, %s329
      %p331 = scmp.eq.s32.totalorder %s32, 0
      %p332 = por %p330, %p331
      %s334 = sadd.s32 %s333, 1
      %p337 = scmp.eq.s32.totalorder %s26, 1
      %p338 = scmp.ne.s32.totalorder %s333, %s335
      %p339 = scmp.eq.s32.totalorder %s26, 0
      %p340 = por %p338, %p339
      %p341 = scmp.ne.s32.totalorder %s333, %s335
      %p342 = scmp.eq.s32.totalorder %s31, 1
      %p343 = por %p341, %p342
      %p344 = scmp.ne.s32.totalorder %s335, %s336
      %p345 = scmp.eq.s32.totalorder %s31, 0
      %p346 = por %p344, %p345
      %p347 = scmp.ne.s32.totalorder %s335, %s336
      %p348 = scmp.eq.s32.totalorder %s32, 1
      %p349 = por %p347, %p348
      %p351 = scmp.ne.s32.totalorder %s336, %s350
      %p352 = scmp.eq.s32.totalorder %s32, 0
      %p353 = por %p351, %p352
      %s355 = sadd.s32 %s354, 1
      %p358 = scmp.eq.s32.totalorder %s26, 1
      %p359 = scmp.ne.s32.totalorder %s354, %s356
      %p360 = scmp.eq.s32.totalorder %s26, 0
      %p361 = por %p359, %p360
      %p362 = scmp.ne.s32.totalorder %s354, %s356
      %p363 = scmp.eq.s32.totalorder %s31, 1
      %p364 = por %p362, %p363
      %p365 = scmp.ne.s32.totalorder %s356, %s357
      %p366 = scmp.eq.s32.totalorder %s31, 0
      %p367 = por %p365, %p366
      %p368 = scmp.ne.s32.totalorder %s356, %s357
      %p369 = scmp.eq.s32.totalorder %s32, 1
      %p370 = por %p368, %p369
      %p372 = scmp.ne.s32.totalorder %s357, %s371
      %p373 = scmp.eq.s32.totalorder %s32, 0
      %p374 = por %p372, %p373
      %s376 = sadd.s32 %s375, 1
      %p379 = scmp.eq.s32.totalorder %s26, 1
      %p380 = scmp.ne.s32.totalorder %s375, %s377
      %p381 = scmp.eq.s32.totalorder %s26, 0
      %p382 = por %p380, %p381
      %p383 = scmp.ne.s32.totalorder %s375, %s377
      %p384 = scmp.eq.s32.totalorder %s31, 1
      %p385 = por %p383, %p384
      %p386 = scmp.ne.s32.totalorder %s377, %s378
      %p387 = scmp.eq.s32.totalorder %s31, 0
      %p388 = por %p386, %p387
      %p389 = scmp.ne.s32.totalorder %s377, %s378
      %p390 = scmp.eq.s32.totalorder %s32, 1
      %p391 = por %p389, %p390
      %p393 = scmp.ne.s32.totalorder %s378, %s392
      %p394 = scmp.eq.s32.totalorder %s32, 0
      %p395 = por %p393, %p394
      %s396 = ssub.s32 %s26, %s33
      %p397 = scmp.eq.s32.totalorder %s396, 0
      %s399 = sadd.s32 %s398, 1
      %s400 = scalar_select %p397, %s398, %s399
      %p403 = pneg %p397
      %p404 = scmp.eq.s32.totalorder %s26, 1
      %p405 = por %p403, %p404
      %p406 = scmp.ne.s32.totalorder %s398, %s401
      %p407 = scmp.eq.s32.totalorder %s26, 0
      %p408 = por %p406, %p407
      %p409 = scmp.ne.s32.totalorder %s398, %s401
      %p410 = scmp.eq.s32.totalorder %s31, 1
      %p411 = por %p409, %p410
      %p412 = scmp.ne.s32.totalorder %s401, %s402
      %p413 = scmp.eq.s32.totalorder %s31, 0
      %p414 = por %p412, %p413
      %p415 = scmp.ne.s32.totalorder %s401, %s402
      %p416 = scmp.eq.s32.totalorder %s32, 1
      %p417 = por %p415, %p416
      %p419 = scmp.ne.s32.totalorder %s402, %s418
      %p420 = scmp.eq.s32.totalorder %s32, 0
      %p421 = por %p419, %p420
      %p422 = scmp.le.s32.totalorder 1, %s26
      %p423 = scmp.lt.s32.totalorder %s26, 3
      %p424 = pnand %p422, %p423
      %p425 = pneg %p424
      // Predicated region
      $region9: #{forward.1} parent=5 // pred_check
        _
      $region10: #{forward.1} parent=5 // pred_check_branch
        %427 = sbr.rel (%p424) target = $region12
      $region11: #{forward.1} parent=5 // pred_region
        %s428 = ssub.s32 %s26, 1
        // Predicated region
        $region13: #{forward.1} parent=11 // pred_check
          %p429 = pneg %p73
        $region14: #{forward.1} parent=11 // pred_check_branch
          %431 = sbr.rel (%p429) target = $region16
        $region15: #{forward.1} parent=11 // pred_region
          _
        $region16: #{forward.1} parent=11 // pred_fallthru
          _
        // Predicated region
        $region17: #{forward.1} parent=11 // pred_check
          %p432 = pneg %p94
        $region18: #{forward.1} parent=11 // pred_check_branch
          %434 = sbr.rel (%p432) target = $region20
        $region19: #{forward.1} parent=11 // pred_region
          _
        $region20: #{forward.1} parent=11 // pred_fallthru
          _
        // Predicated region
        $region21: #{forward.1} parent=11 // pred_check
          %p435 = pneg %p115
        $region22: #{forward.1} parent=11 // pred_check_branch
          %437 = sbr.rel (%p435) target = $region24
        $region23: #{forward.1} parent=11 // pred_region
          _
        $region24: #{forward.1} parent=11 // pred_fallthru
          _
        // Predicated region
        $region25: #{forward.1} parent=11 // pred_check
          %p438 = pneg %p136
        $region26: #{forward.1} parent=11 // pred_check_branch
          %440 = sbr.rel (%p438) target = $region28
        $region27: #{forward.1} parent=11 // pred_region
          _
        $region28: #{forward.1} parent=11 // pred_fallthru
          _
        // Predicated region
        $region29: #{forward.1} parent=11 // pred_check
          %p441 = pneg %p157
        $region30: #{forward.1} parent=11 // pred_check_branch
          %443 = sbr.rel (%p441) target = $region32
        $region31: #{forward.1} parent=11 // pred_region
          _
        $region32: #{forward.1} parent=11 // pred_fallthru
          _
        // Predicated region
        $region33: #{forward.1} parent=11 // pred_check
          %p444 = pneg %p178
        $region34: #{forward.1} parent=11 // pred_check_branch
          %446 = sbr.rel (%p444) target = $region36
        $region35: #{forward.1} parent=11 // pred_region
          _
        $region36: #{forward.1} parent=11 // pred_fallthru
          _
        // Predicated region
        $region37: #{forward.1} parent=11 // pred_check
          %p447 = pneg %p199
        $region38: #{forward.1} parent=11 // pred_check_branch
          %449 = sbr.rel (%p447) target = $region40
        $region39: #{forward.1} parent=11 // pred_region
          _
        $region40: #{forward.1} parent=11 // pred_fallthru
          _
        // Predicated region
        $region41: #{forward.1} parent=11 // pred_check
          %p450 = pneg %p220
        $region42: #{forward.1} parent=11 // pred_check_branch
          %452 = sbr.rel (%p450) target = $region44
        $region43: #{forward.1} parent=11 // pred_region
          _
        $region44: #{forward.1} parent=11 // pred_fallthru
          _
        // Predicated region
        $region45: #{forward.1} parent=11 // pred_check
          %p453 = pneg %p241
        $region46: #{forward.1} parent=11 // pred_check_branch
          %455 = sbr.rel (%p453) target = $region48
        $region47: #{forward.1} parent=11 // pred_region
          _
        $region48: #{forward.1} parent=11 // pred_fallthru
          _
        // Predicated region
        $region49: #{forward.1} parent=11 // pred_check
          %p456 = pneg %p262
        $region50: #{forward.1} parent=11 // pred_check_branch
          %458 = sbr.rel (%p456) target = $region52
        $region51: #{forward.1} parent=11 // pred_region
          _
        $region52: #{forward.1} parent=11 // pred_fallthru
          _
        // Predicated region
        $region53: #{forward.1} parent=11 // pred_check
          %p459 = pneg %p283
        $region54: #{forward.1} parent=11 // pred_check_branch
          %461 = sbr.rel (%p459) target = $region56
        $region55: #{forward.1} parent=11 // pred_region
          _
        $region56: #{forward.1} parent=11 // pred_fallthru
          _
        // Predicated region
        $region57: #{forward.1} parent=11 // pred_check
          %p462 = pneg %p304
        $region58: #{forward.1} parent=11 // pred_check_branch
          %464 = sbr.rel (%p462) target = $region60
        $region59: #{forward.1} parent=11 // pred_region
          _
        $region60: #{forward.1} parent=11 // pred_fallthru
          _
        // Predicated region
        $region61: #{forward.1} parent=11 // pred_check
          %p465 = pneg %p325
        $region62: #{forward.1} parent=11 // pred_check_branch
          %467 = sbr.rel (%p465) target = $region64
        $region63: #{forward.1} parent=11 // pred_region
          _
        $region64: #{forward.1} parent=11 // pred_fallthru
          _
        // Predicated region
        $region65: #{forward.1} parent=11 // pred_check
          %p468 = pneg %p346
        $region66: #{forward.1} parent=11 // pred_check_branch
          %470 = sbr.rel (%p468) target = $region68
        $region67: #{forward.1} parent=11 // pred_region
          _
        $region68: #{forward.1} parent=11 // pred_fallthru
          _
        // Predicated region
        $region69: #{forward.1} parent=11 // pred_check
          %p471 = pneg %p367
        $region70: #{forward.1} parent=11 // pred_check_branch
          %473 = sbr.rel (%p471) target = $region72
        $region71: #{forward.1} parent=11 // pred_region
          _
        $region72: #{forward.1} parent=11 // pred_fallthru
          _
        // Predicated region
        $region73: #{forward.1} parent=11 // pred_check
          %p474 = pneg %p388
        $region74: #{forward.1} parent=11 // pred_check_branch
          %476 = sbr.rel (%p474) target = $region76
        $region75: #{forward.1} parent=11 // pred_region
          _
        $region76: #{forward.1} parent=11 // pred_fallthru
          _
      $region12: #{forward.1} parent=5 // pred_fallthru
        _
      %p477 = scmp.lt.s32.totalorder %s26, 2
      // Predicated region
      $region77: #{forward.1} parent=5 // pred_check
        %p478 = pneg %p477
      $region78: #{forward.1} parent=5 // pred_check_branch
        %480 = sbr.rel (%p478) target = $region80
      $region79: #{forward.1} parent=5 // pred_region
        // Predicated region
        $region81: #{forward.1} parent=79 // pred_check
          %p481 = pneg %p46
        $region82: #{forward.1} parent=79 // pred_check_branch
          %483 = sbr.rel (%p481) target = $region84
        $region83: #{forward.1} parent=79 // pred_region
          %p484 = scmp.lt.s32.totalorder %s26, 1
          %s485 = scalar_select %p484, %s26, 1
          %s486 = smul.addr %s485, 2
          %s487 = smul.addr %s486, 8
          %s488 = scalar_lea.vmem %s0, %s487
        $region84: #{forward.1} parent=79 // pred_fallthru
          _
      $region80: #{forward.1} parent=5 // pred_fallthru
        _
      %p489 = scmp.le.s32.totalorder 1, %s26
      %p490 = scmp.lt.s32.totalorder %s26, 3
      %p491 = pnand %p489, %p490
      %p492 = pneg %p491
      // Predicated region
      $region85: #{forward.1} parent=5 // pred_check
        _
      $region86: #{forward.1} parent=5 // pred_check_branch
        %494 = sbr.rel (%p491) target = $region88
      $region87: #{forward.1} parent=5 // pred_region
        %s495 = ssub.s32 %s26, 1
        %p496 = scmp.lt.s32.totalorder %s31, 1
        %s497 = scalar_select %p496, %s31, 1
        %s498 = smul.addr %s497, 2
        %s499 = smul.addr %s498, 8
        %s500 = scalar_lea.vmem %s0, %s499
        %p501 = pneg %p52
        %p502 = pneg %p49
        %p503 = pneg %p73
        %p504 = pneg %p70
        %p505 = pneg %p94
        %p506 = pneg %p91
        %p507 = pneg %p115
        %p508 = pneg %p112
        %p509 = pneg %p136
        %p510 = pneg %p133
        %p511 = pneg %p157
        %p512 = pneg %p154
        %p513 = pneg %p178
        %p514 = pneg %p175
        %p515 = pneg %p199
        %p516 = pneg %p196
        %p517 = pneg %p220
        %p518 = pneg %p217
        %p519 = pneg %p241
        %p520 = pneg %p238
        %p521 = pneg %p262
        %p522 = pneg %p259
        %p523 = pneg %p283
        %p524 = pneg %p280
        %p525 = pneg %p304
        %p526 = pneg %p301
        %p527 = pneg %p325
        %p528 = pneg %p322
        %p529 = pneg %p346
        %p530 = pneg %p343
        %p531 = pneg %p367
        %p532 = pneg %p364
        %p533 = pneg %p388
        %p534 = pneg %p385
        %p535 = pneg %p414
        %p536 = pneg %p411
        %s537 = sand.u32 %s401, 1
        %s538 = scalar_lea.sflag [#allocation3], %s537
        %s539 = sand.u32 %s401, 1
        %s540 = smul.addr %s539, 16
        %s541 = scalar_lea.vmem [#allocation2], %s540
        %p542 = scmp.lt.s32.totalorder %s31, 1
        %s543 = scalar_select %p542, %s31, 1
        %s544 = smul.addr %s543, 2
        %s545 = smul.addr %s544, 8
        %s546 = scalar_lea.vmem %s0, %s545
        %v547 = vld [vmem:[%s546] sm:$0xff]
        %v548 = vld [vmem:[%s546 + $0x8] sm:$0xff]
        %v549 = vld [vmem:[%s1] sm:$0xff]
        %v550 = vld [vmem:[%s1 + $0x8] sm:$0xff]
        %v551 = vld [vmem:[%s1 + $0x10] sm:$0xff]
        %v552 = vld [vmem:[%s1 + $0x18] sm:$0xff]
        %v553 = vld [vmem:[%s1 + $0x20] sm:$0xff]
        %v554 = vld [vmem:[%s1 + $0x28] sm:$0xff]
        %v555 = vld [vmem:[%s1 + $0x30] sm:$0xff]
        %v556 = vld [vmem:[%s1 + $0x38] sm:$0xff]
        %v557 = vld [vmem:[%s1 + $0x40] sm:$0xff]
        %v558 = vld [vmem:[%s1 + $0x48] sm:$0xff]
        %v559 = vld [vmem:[%s1 + $0x50] sm:$0xff]
        %v560 = vld [vmem:[%s1 + $0x58] sm:$0xff]
        %v561 = vld [vmem:[%s1 + $0x60] sm:$0xff]
        %v562 = vld [vmem:[%s1 + $0x68] sm:$0xff]
        %v563 = vld [vmem:[%s1 + $0x70] sm:$0xff]
        %v564 = vld [vmem:[%s1 + $0x78] sm:$0xff]
        %v565 = vld [vmem:[%s1 + $0x80] sm:$0x3]
        %v566 = vld [vmem:[%s2] sm:$0x1]
        %v568 = vperm.slane %v566, 0
        %vm570 = vcmask 15360
        %v572 = vsel %vm570, %v548, 0
        %vm574 = vcmask 1041408
        %v576 = vsel %vm574, %v565, 0
        %578 = vmatpush.msra.mxu0 %v564
        %579 = vmatpush.msra.mxu0 %v563
        %580 = vmatpush.msra.mxu0 %v562
        %581 = vmatpush.msra.mxu0 %v561
        %582 = vmatpush.msra.mxu0 %v560
        %583 = vmatpush.msra.mxu0 %v559
        %584 = vmatpush.msra.mxu0 %v558
        %585 = vmatpush.msra.mxu0 %v557
        %586 = vmatpush.msra.mxu0 %v556
        %587 = vmatpush.msra.mxu0 %v555
        %588 = vmatpush.msra.mxu0 %v554
        %589 = vmatpush.msra.mxu0 %v553
        %590 = vmatpush.msra.mxu0 %v552
        %591 = vmatpush.msra.mxu0 %v551
        %592 = vmatpush.msra.mxu0 %v550
        %593 = vmatpush.msra.mxu0 %v549
        %594 = vmatmul.f32.gmra.mxu0 %v547
        %v595 = vpop.f32.mrf.mxu0
        %v596 = vadd.f32 %v568, %v595
        %597 = vdwg.mxu0
        %598 = vmatpush.msra.mxu0 0.0
        %599 = vmatpush.msra.mxu0 0.0
        %600 = vmatpush.msra.mxu0 0.0
        %601 = vmatpush.msra.mxu0 0.0
        %602 = vmatpush.msra.mxu0 0.0
        %603 = vmatpush.msra.mxu0 0.0
        %604 = vmatpush.msra.mxu0 0.0
        %605 = vmatpush.msra.mxu0 0.0
        %606 = vmatpush.msra.mxu0 0.0
        %607 = vmatpush.msra.mxu0 0.0
        %608 = vmatpush.msra.mxu0 0.0
        %609 = vmatpush.msra.mxu0 0.0
        %610 = vmatpush.msra.mxu0 0.0
        %611 = vmatpush.msra.mxu0 0.0
        %612 = vmatpush.msra.mxu0 0.0
        %613 = vmatpush.msra.mxu0 %v576
        %614 = vmatmul.f32.gmra.mxu0 %v572
        %v615 = vpop.f32.mrf.mxu0
        %v616 = vadd.f32 %v596, %v615
        %617 = vdwg.mxu0
        %v618 = vmax.f32 %v616, 0.0
        %v619 = vld [vmem:[%s3] sm:$0xff]
        %v620 = vld [vmem:[%s3 + $0x8] sm:$0xff]
        %v621 = vld [vmem:[%s3 + $0x10] sm:$0xff]
        %v622 = vld [vmem:[%s3 + $0x18] sm:$0xff]
        %v623 = vld [vmem:[%s3 + $0x20] sm:$0xff]
        %v624 = vld [vmem:[%s3 + $0x28] sm:$0xff]
        %v625 = vld [vmem:[%s3 + $0x30] sm:$0xff]
        %v626 = vld [vmem:[%s3 + $0x38] sm:$0xff]
        %v627 = vld [vmem:[%s4] sm:$0x1]
        %v629 = vperm.slane %v627, 0
        %vm631 = vcmask 523264
        %v633 = vsel %vm631, %v618, 0
        %635 = vmatpush.msra.mxu0 0.0
        %636 = vmatpush.msra.mxu0 0.0
        %637 = vmatpush.msra.mxu0 0.0
        %638 = vmatpush.msra.mxu0 0.0
        %639 = vmatpush.msra.mxu0 0.0
        %640 = vmatpush.msra.mxu0 0.0
        %641 = vmatpush.msra.mxu0 0.0
        %642 = vmatpush.msra.mxu0 0.0
        %643 = vmatpush.msra.mxu0 %v626
        %644 = vmatpush.msra.mxu0 %v625
        %645 = vmatpush.msra.mxu0 %v624
        %646 = vmatpush.msra.mxu0 %v623
        %647 = vmatpush.msra.mxu0 %v622
        %648 = vmatpush.msra.mxu0 %v621
        %649 = vmatpush.msra.mxu0 %v620
        %650 = vmatpush.msra.mxu0 %v619
        %651 = vmatmul.f32.gmra.mxu0 %v633
        %v652 = vpop.f32.mrf.mxu0
        %v653 = vadd.f32 %v629, %v652
        %654 = vdwg.mxu0
        %v655 = vmax.f32 %v653, 0.0
        %v656 = vld [vmem:[%s5] sm:$0xff]
        %v657 = vld [vmem:[%s5 + $0x8] sm:$0xff]
        %v658 = vld [vmem:[%s5 + $0x10] sm:$0xff]
        %v659 = vld [vmem:[%s5 + $0x18] sm:$0xff]
        %v660 = vld [vmem:[%s6] sm:$0x1]
        %v662 = vperm.slane %v660, 0
        %vm664 = vcmask 261120
        %v666 = vsel %vm664, %v655, 0
        %668 = vmatpush.msra.mxu0 0.0
        %669 = vmatpush.msra.mxu0 0.0
        %670 = vmatpush.msra.mxu0 0.0
        %671 = vmatpush.msra.mxu0 0.0
        %672 = vmatpush.msra.mxu0 0.0
        %673 = vmatpush.msra.mxu0 0.0
        %674 = vmatpush.msra.mxu0 0.0
        %675 = vmatpush.msra.mxu0 0.0
        %676 = vmatpush.msra.mxu0 0.0
        %677 = vmatpush.msra.mxu0 0.0
        %678 = vmatpush.msra.mxu0 0.0
        %679 = vmatpush.msra.mxu0 0.0
        %680 = vmatpush.msra.mxu0 %v659
        %681 = vmatpush.msra.mxu0 %v658
        %682 = vmatpush.msra.mxu0 %v657
        %683 = vmatpush.msra.mxu0 %v656
        %684 = vmatmul.f32.gmra.mxu0 %v666
        %v685 = vpop.f32.mrf.mxu0
        %v686 = vadd.f32 %v662, %v685
        %687 = vdwg.mxu0
        %v688 = vmax.f32 %v686, 0.0
        %v689 = vld [vmem:[%s7] sm:$0xff]
        %v690 = vld [vmem:[%s7 + $0x8] sm:$0xff]
        %v691 = vld [vmem:[%s8] sm:$0x1]
        %v693 = vperm.slane %v691, 0
        %vm695 = vcmask 130048
        %v697 = vsel %vm695, %v688, 0
        %699 = vmatpush.msra.mxu0 0.0
        %700 = vmatpush.msra.mxu0 0.0
        %701 = vmatpush.msra.mxu0 0.0
        %702 = vmatpush.msra.mxu0 0.0
        %703 = vmatpush.msra.mxu0 0.0
        %704 = vmatpush.msra.mxu0 0.0
        %705 = vmatpush.msra.mxu0 0.0
        %706 = vmatpush.msra.mxu0 0.0
        %707 = vmatpush.msra.mxu0 0.0
        %708 = vmatpush.msra.mxu0 0.0
        %709 = vmatpush.msra.mxu0 0.0
        %710 = vmatpush.msra.mxu0 0.0
        %711 = vmatpush.msra.mxu0 0.0
        %712 = vmatpush.msra.mxu0 0.0
        %713 = vmatpush.msra.mxu0 %v690
        %714 = vmatpush.msra.mxu0 %v689
        %715 = vmatmul.f32.gmra.mxu0 %v697
        %v716 = vpop.f32.mrf.mxu0
        %v717 = vadd.f32 %v693, %v716
        %718 = vdwg.mxu0
        %v719 = vmax.f32 %v717, 0.0
        %v720 = vld [vmem:[%s9] sm:$0xff]
        %v721 = vld [vmem:[%s10] sm:$0x1]
        %v723 = vperm.slane %v721, 0
        %vm725 = vcmask 64512
        %v727 = vsel %vm725, %v719, 0
        %729 = vmatpush.msra.mxu0 0.0
        %730 = vmatpush.msra.mxu0 0.0
        %731 = vmatpush.msra.mxu0 0.0
        %732 = vmatpush.msra.mxu0 0.0
        %733 = vmatpush.msra.mxu0 0.0
        %734 = vmatpush.msra.mxu0 0.0
        %735 = vmatpush.msra.mxu0 0.0
        %736 = vmatpush.msra.mxu0 0.0
        %737 = vmatpush.msra.mxu0 0.0
        %738 = vmatpush.msra.mxu0 0.0
        %739 = vmatpush.msra.mxu0 0.0
        %740 = vmatpush.msra.mxu0 0.0
        %741 = vmatpush.msra.mxu0 0.0
        %742 = vmatpush.msra.mxu0 0.0
        %743 = vmatpush.msra.mxu0 0.0
        %744 = vmatpush.msra.mxu0 %v720
        %745 = vmatmul.f32.gmra.mxu0 %v727
        %v746 = vpop.f32.mrf.mxu0
        %v747 = vadd.f32 %v723, %v746
        %748 = vdwg.mxu0
        %v749 = vmax.f32 %v747, 0.0
        %v750 = vld [vmem:[%s11] sm:$0xff]
        %v751 = vld [vmem:[%s11 + $0x8] sm:$0xff]
        %v752 = vld [vmem:[%s12] sm:$0x1]
        %v754 = vperm.slane %v752, 0
        %v757 = vsel %vm695, %v749, 0
        %759 = vmatpush.msra.mxu0 0.0
        %760 = vmatpush.msra.mxu0 0.0
        %761 = vmatpush.msra.mxu0 0.0
        %762 = vmatpush.msra.mxu0 0.0
        %763 = vmatpush.msra.mxu0 0.0
        %764 = vmatpush.msra.mxu0 0.0
        %765 = vmatpush.msra.mxu0 0.0
        %766 = vmatpush.msra.mxu0 0.0
        %767 = vmatpush.msra.mxu0 0.0
        %768 = vmatpush.msra.mxu0 0.0
        %769 = vmatpush.msra.mxu0 0.0
        %770 = vmatpush.msra.mxu0 0.0
        %771 = vmatpush.msra.mxu0 0.0
        %772 = vmatpush.msra.mxu0 0.0
        %773 = vmatpush.msra.mxu0 %v751
        %774 = vmatpush.msra.mxu0 %v750
        %775 = vmatmul.f32.gmra.mxu0 %v757
        %v776 = vpop.f32.mrf.mxu0
        %v777 = vadd.f32 %v754, %v776
        %778 = vdwg.mxu0
        %v779 = vmax.f32 %v777, 0.0
        %v780 = vld [vmem:[%s13] sm:$0xff]
        %v781 = vld [vmem:[%s13 + $0x8] sm:$0xff]
        %v782 = vld [vmem:[%s13 + $0x10] sm:$0xff]
        %v783 = vld [vmem:[%s13 + $0x18] sm:$0xff]
        %v784 = vld [vmem:[%s14] sm:$0x1]
        %v786 = vperm.slane %v784, 0
        %v789 = vsel %vm664, %v779, 0
        %791 = vmatpush.msra.mxu0 0.0
        %792 = vmatpush.msra.mxu0 0.0
        %793 = vmatpush.msra.mxu0 0.0
        %794 = vmatpush.msra.mxu0 0.0
        %795 = vmatpush.msra.mxu0 0.0
        %796 = vmatpush.msra.mxu0 0.0
        %797 = vmatpush.msra.mxu0 0.0
        %798 = vmatpush.msra.mxu0 0.0
        %799 = vmatpush.msra.mxu0 0.0
        %800 = vmatpush.msra.mxu0 0.0
        %801 = vmatpush.msra.mxu0 0.0
        %802 = vmatpush.msra.mxu0 0.0
        %803 = vmatpush.msra.mxu0 %v783
        %804 = vmatpush.msra.mxu0 %v782
        %805 = vmatpush.msra.mxu0 %v781
        %806 = vmatpush.msra.mxu0 %v780
        %807 = vmatmul.f32.gmra.mxu0 %v789
        %v808 = vpop.f32.mrf.mxu0
        %v809 = vadd.f32 %v786, %v808
        %810 = vdwg.mxu0
        %v811 = vmax.f32 %v809, 0.0
        %v812 = vld [vmem:[%s15] sm:$0xff]
        %v813 = vld [vmem:[%s15 + $0x8] sm:$0xff]
        %v814 = vld [vmem:[%s15 + $0x10] sm:$0xff]
        %v815 = vld [vmem:[%s15 + $0x18] sm:$0xff]
        %v816 = vld [vmem:[%s15 + $0x20] sm:$0xff]
        %v817 = vld [vmem:[%s15 + $0x28] sm:$0xff]
        %v818 = vld [vmem:[%s15 + $0x30] sm:$0xff]
        %v819 = vld [vmem:[%s15 + $0x38] sm:$0xff]
        %v820 = vld [vmem:[%s15 + $0x40] sm:$0xff]
        %v821 = vld [vmem:[%s15 + $0x48] sm:$0xff]
        %v822 = vld [vmem:[%s15 + $0x50] sm:$0xff]
        %v823 = vld [vmem:[%s15 + $0x58] sm:$0xff]
        %v824 = vld [vmem:[%s15 + $0x60] sm:$0xff]
        %v825 = vld [vmem:[%s15 + $0x68] sm:$0xff]
        %v826 = vld [vmem:[%s15 + $0x70] sm:$0xff]
        %v827 = vld [vmem:[%s15 + $0x78] sm:$0xff]
        %v828 = vld [vmem:[%s16] sm:$0x3]
        %v830 = vperm.slane %v828, 0
        %v831 = vperm.slane %v828, 1
        %v835 = vsel %vm631, %v811, 0
        %837 = vmatpush.msra.mxu0 0.0
        %838 = vmatpush.msra.mxu0 0.0
        %839 = vmatpush.msra.mxu0 0.0
        %840 = vmatpush.msra.mxu0 0.0
        %841 = vmatpush.msra.mxu0 0.0
        %842 = vmatpush.msra.mxu0 0.0
        %843 = vmatpush.msra.mxu0 0.0
        %844 = vmatpush.msra.mxu0 0.0
        %845 = vmatpush.msra.mxu0 %v826
        %846 = vmatpush.msra.mxu0 %v824
        %847 = vmatpush.msra.mxu0 %v822
        %848 = vmatpush.msra.mxu0 %v820
        %849 = vmatpush.msra.mxu0 %v818
        %850 = vmatpush.msra.mxu0 %v816
        %851 = vmatpush.msra.mxu0 %v814
        %852 = vmatpush.msra.mxu0 %v812
        %853 = vmatmul.f32.gmra.mxu0 %v835
        %v854 = vpop.f32.mrf.mxu0
        %v855 = vadd.f32 %v830, %v854
        %856 = vdwg.mxu0
        %857 = vmatpush.msra.mxu0 0.0
        %858 = vmatpush.msra.mxu0 0.0
        %859 = vmatpush.msra.mxu0 0.0
        %860 = vmatpush.msra.mxu0 0.0
        %861 = vmatpush.msra.mxu0 0.0
        %862 = vmatpush.msra.mxu0 0.0
        %863 = vmatpush.msra.mxu0 0.0
        %864 = vmatpush.msra.mxu0 0.0
        %865 = vmatpush.msra.mxu0 %v827
        %866 = vmatpush.msra.mxu0 %v825
        %867 = vmatpush.msra.mxu0 %v823
        %868 = vmatpush.msra.mxu0 %v821
        %869 = vmatpush.msra.mxu0 %v819
        %870 = vmatpush.msra.mxu0 %v817
        %871 = vmatpush.msra.mxu0 %v815
        %872 = vmatpush.msra.mxu0 %v813
        %873 = vmatmul.f32.gmra.mxu0 %v835
        %v874 = vpop.f32.mrf.mxu0
        %v875 = vadd.f32 %v831, %v874
        %876 = vdwg.mxu0
        %v877 = vxor.u32 %v855, 2147483648
        %v878 = vxor.u32 %v875, 2147483648
        %v879 = vmul.f32 %v877, 1.442695
        %v880 = vpow.pop %v879
        %v881 = vmul.f32 %v878, 1.442695
        %v882 = vpow.pop %v881
        %v883 = vadd.f32 %v880, 1.0
        %v884 = vadd.f32 %v882, 1.0
        %v885 = vrcp.pop %v883
        %v886 = vmul.f32 %v883, %v885
        %v887 = vsub.f32 1.0, %v886
        %v888 = vmul.f32 %v885, %v887
        %v889 = vadd.f32 %v885, %v888
        %vm890 = vweird.f32 %v883
        %vm891 = vweird.f32 %v885
        %vm892 = vmor %vm890, %vm891
        %v893 = vsel %vm892, %v885, %v889
        %v894 = vand.u32 2147483647, %v883
        %vm895 = vcmp.eq.f32.partialorder %v894, 8.507059e+37
        %v896 = vand.u32 %v883, 2147483648
        %v897 = vor.u32 1.1754944e-38, %v896
        %v898 = vsel %vm895, %v897, %v893
        %v899 = vmul.f32 1.0, %v898
        %v900 = vrcp.pop %v884
        %v901 = vmul.f32 %v884, %v900
        %v902 = vsub.f32 1.0, %v901
        %v903 = vmul.f32 %v900, %v902
        %v904 = vadd.f32 %v900, %v903
        %vm905 = vweird.f32 %v884
        %vm906 = vweird.f32 %v900
        %vm907 = vmor %vm905, %vm906
        %v908 = vsel %vm907, %v900, %v904
        %v909 = vand.u32 2147483647, %v884
        %vm910 = vcmp.eq.f32.partialorder %v909, 8.507059e+37
        %v911 = vand.u32 %v884, 2147483648
        %v912 = vor.u32 1.1754944e-38, %v911
        %v913 = vsel %vm910, %v912, %v908
        %v914 = vmul.f32 1.0, %v913
        %915 = vst [vmem:[%s541] sm:$0xff] %v899
        %916 = vst.msk [vmem:[%s541 + $0x8] sm:$0xff] %vm570, %v914
        %s917 = sand.u32 %s401, 1
        %s918 = scalar_lea.sflag [#allocation3], %s917
        %s919 = sand.u32 %s401, 1
        %s920 = smul.addr %s919, 16
        %s921 = scalar_lea.vmem [#allocation2], %s920
        // Predicated region
        $region89: #{forward.1} parent=87 // pred_check
          %p922 = pneg %p411
        $region90: #{forward.1} parent=87 // pred_check_branch
          %924 = sbr.rel (%p922) target = $region92
        $region91: #{forward.1} parent=87 // pred_region
          %926 = vsyncadd %s918, 0
          %s927 = smul.addr %s31, 2
          %s928 = smul.addr %s927, 8
          %s929 = scalar_lea.hbm %s17, %s928
          %s931 = sshll.u32 %s921, 4
          %s932 = int_to_ptr.vmem [resolvable:$true] %s931
          %s933 = sshll.u32 %s929, 4
          %s934 = int_to_ptr.hbm [resolvable:$true] %s933
          %936 = dma.vmem_to_hbm [thread:$0]  %s932, 256, %s934, %s918
        $region92: #{forward.1} parent=87 // pred_fallthru
          _
      $region88: #{forward.1} parent=5 // pred_fallthru
        _
      %p937 = scmp.le.s32.totalorder 2, %s26
      // Predicated region
      $region93: #{forward.1} parent=5 // pred_check
        %p938 = pneg %p937
      $region94: #{forward.1} parent=5 // pred_check_branch
        %940 = sbr.rel (%p938) target = $region96
      $region95: #{forward.1} parent=5 // pred_region
        %s941 = ssub.s32 %s26, 2
        // Predicated region
        $region97: #{forward.1} parent=95 // pred_check
          %p942 = pneg %p417
        $region98: #{forward.1} parent=95 // pred_check_branch
          %944 = sbr.rel (%p942) target = $region100
        $region99: #{forward.1} parent=95 // pred_region
          %s945 = sand.u32 %s402, 1
          %s946 = scalar_lea.sflag [#allocation3], %s945
          %s947 = sand.u32 %s402, 1
          %s948 = smul.addr %s947, 16
          %s949 = scalar_lea.vmem [#allocation2], %s948
          %951 = dma.done %s946, 256
        $region100: #{forward.1} parent=95 // pred_fallthru
          _
      $region96: #{forward.1} parent=5 // pred_fallthru
        _
    $region6: #{forward.1} parent=1 // loop_footer
      %s30 = sadd.s32 1, %s26
    $region7: #{forward.1} parent=1 // loop_footer_branch
      %25 = sbr.rel target = $region3
    $region8: #{forward.1} parent=1 // loop_exit
      _
    %952 = vsyncpa [#allocation3], 1
    %s953 = scalar_lea.sflag [#allocation3], 1
    %954 = vsyncpa %s953, 1

</llo_original>
